<compile_context>
chip_gen: v7x
topology: tpu7x:2x2x1
jax: 0.10.0
libtpu: 0.0.40
codegen_flags: <defaults>
</compile_context>

<pallas_src>
import math

import jax
import jax.numpy as jnp
from jax.experimental import pallas as pl
from jax.experimental.pallas import tpu as pltpu

block_size = 16   # max sequence length (the tril mask size)
n_embd = 384
head_size = 64


def head_kernel(x_ref, wqkv_ref, o_ref):
    # x_ref:    (B*T, C)  bf16   flattened input
    # wqkv_ref: (C, 3H)   bf16   [w_key | w_query | w_value] concatenated on N
    # o_ref:    (B, T, H) f32
    B, T, H = o_ref.shape

    # Single fused QKV projection on the MXU, f32 accumulation.
    qkv = jnp.dot(x_ref[...], wqkv_ref[...],
                  preferred_element_type=jnp.float32)             # (B*T, 3H)

    k = qkv[:, 0 * H:1 * H].reshape(B, T, H)
    q = qkv[:, 1 * H:2 * H].reshape(B, T, H)
    v = qkv[:, 2 * H:3 * H].reshape(B, T, H)

    # Scores: contract over the head dim of both operands (no explicit k.T).
    scale = 1.0 / math.sqrt(H)                                    # head_size ** -0.5
    s = jnp.einsum('bqd,bkd->bqk', q, k,
                   preferred_element_type=jnp.float32) * scale    # (B, T, T)

    # Causal mask: keep positions where col <= row. Large finite negative
    # instead of -inf (safe under reduced precision / empty-row edge cases).
    row = jax.lax.broadcasted_iota(jnp.int32, (B, T, T), 1)
    col = jax.lax.broadcasted_iota(jnp.int32, (B, T, T), 2)
    s = jnp.where(col <= row, s, jnp.float32(-1e30))

    # Numerically stable softmax along the last dim (f32 throughout).
    s = s - jnp.max(s, axis=-1, keepdims=True)
    e = jnp.exp(s)
    p = e / jnp.sum(e, axis=-1, keepdims=True)

    # dropout: eval mode -> identity

    out = jnp.einsum('bqk,bkd->bqd', p.astype(v.dtype), v,
                     preferred_element_type=jnp.float32)          # (B, T, H)
    o_ref[...] = out.astype(o_ref.dtype)


def head_forward(x, w_key, w_query, w_value):
    """x: (B, T, C) float32; w_*: (C, H) float32 -> (B, T, H) float32."""
    B, T, C = x.shape
    H = w_key.shape[1]

    # Fuse the three projection weights into one (C, 3H) operand and cast the
    # MXU operands to bf16 (accumulation stays f32 inside the kernel).
    w_qkv = jnp.concatenate([w_key, w_query, w_value], axis=1).astype(jnp.bfloat16)
    x2d = x.reshape(B * T, C).astype(jnp.bfloat16)

    # Single invocation, no grid: the whole working set lives in VMEM.
    return pl.pallas_call(
        head_kernel,
        out_shape=jax.ShapeDtypeStruct((B, T, H), x.dtype),
        in_specs=[
            pl.BlockSpec(memory_space=pltpu.MemorySpace.VMEM),   # x (whole array)
            pl.BlockSpec(memory_space=pltpu.MemorySpace.VMEM),   # fused W_qkv
        ],
        out_specs=pl.BlockSpec(memory_space=pltpu.MemorySpace.VMEM),
    )(x2d, w_qkv)


def head_reference(x, w_key, w_query, w_value):
    """Pure-JAX f32 reference matching the PyTorch forward (eval mode)."""
    k = x @ w_key
    q = x @ w_query
    v = x @ w_value
    wei = (q @ jnp.swapaxes(k, -2, -1)) * (k.shape[-1] ** -0.5)
    T = x.shape[1]
    tril = jnp.tril(jnp.ones((T, T), dtype=bool))
    wei = jnp.where(tril, wei, -jnp.inf)
    wei = jax.nn.softmax(wei, axis=-1)
    return wei @ v


if __name__ == "__main__":
    key = jax.random.PRNGKey(0)
    kx, kk, kq, kv = jax.random.split(key, 4)

    B, T, C, H = 2, block_size, n_embd, head_size

    x = jax.random.normal(kx, (B, T, C), dtype=jnp.float32)
    # Deterministic init mimicking nn.Linear (uniform in +/- 1/sqrt(fan_in)),
    # stored transposed as (C, H) so the kernel does x @ W.
    bound = 1.0 / math.sqrt(C)
    w_key = jax.random.uniform(kk, (C, H), jnp.float32, -bound, bound)
    w_query = jax.random.uniform(kq, (C, H), jnp.float32, -bound, bound)
    w_value = jax.random.uniform(kv, (C, H), jnp.float32, -bound, bound)

    out = head_forward(x, w_key, w_query, w_value)
    out = jax.block_until_ready(out)

    ref = head_reference(x, w_key, w_query, w_value)
    assert out.shape == (B, T, H)
    # bf16 MXU operands (f32 accumulation) -> loosened tolerance vs f32 reference.
    assert jnp.allclose(out, ref, atol=2e-2, rtol=2e-2), "mismatch vs reference"

    print("KERNEL_OK")
</pallas_src>

<mosaic_0001>
module attributes {stable_mosaic.version = 11 : i64} {
  func.func @head_kernel(%arg0: memref<32x384xbf16, #tpu.memory_space<vmem>>, %arg1: memref<384x192xbf16, #tpu.memory_space<vmem>>, %arg2: memref<2x16x64xf32, #tpu.memory_space<vmem>>) attributes {dimension_semantics = [], scalar_prefetch = 0 : i64, scratch_operands = 0 : i64, tpu.core_type = #tpu.core_type<tc>} {
    %c0 = arith.constant 0 : index
    %c0_0 = arith.constant 0 : index
    %0 = vector.load %arg0[%c0, %c0_0] : memref<32x384xbf16, #tpu.memory_space<vmem>>, vector<32x384xbf16>
    %c0_1 = arith.constant 0 : index
    %c0_2 = arith.constant 0 : index
    %1 = vector.load %arg1[%c0_1, %c0_2] : memref<384x192xbf16, #tpu.memory_space<vmem>>, vector<384x192xbf16>
    %cst = arith.constant dense<0.000000e+00> : vector<32x192xf32>
    %2 = tpu.matmul %0, %1, %cst {dimension_numbers = #tpu.dot_dimension_numbers<[1], [0], [0], [1], [0, 0, 1, 1], [], []>} : vector<32x384xbf16>, vector<384x192xbf16>, vector<32x192xf32> -> vector<32x192xf32>
    %3 = vector.extract_strided_slice %2 {offsets = [0, 0], sizes = [32, 64], strides = [1, 1]} : vector<32x192xf32> to vector<32x64xf32>
    %4 = vector.shape_cast %3 : vector<32x64xf32> to vector<2x16x64xf32>
    %5 = vector.extract_strided_slice %2 {offsets = [0, 64], sizes = [32, 64], strides = [1, 1]} : vector<32x192xf32> to vector<32x64xf32>
    %6 = vector.shape_cast %5 : vector<32x64xf32> to vector<2x16x64xf32>
    %7 = vector.extract_strided_slice %2 {offsets = [0, 128], sizes = [32, 64], strides = [1, 1]} : vector<32x192xf32> to vector<32x64xf32>
    %8 = vector.shape_cast %7 : vector<32x64xf32> to vector<2x16x64xf32>
    "tpu.trace_start"() <{level = 10 : i32, message = "bqd,bkd->bqk"}> : () -> ()
    %cst_3 = arith.constant dense<0.000000e+00> : vector<2x16x16xf32>
    %9 = tpu.matmul %6, %4, %cst_3 {dimension_numbers = #tpu.dot_dimension_numbers<[2], [2], [1], [1], [0, 0, 0, 1, 1, 1], [0], [0]>} : vector<2x16x64xf32>, vector<2x16x64xf32>, vector<2x16x16xf32> -> vector<2x16x16xf32>
    "tpu.trace_stop"() : () -> ()
    %cst_4 = arith.constant 1.250000e-01 : f32
    %10 = vector.broadcast %cst_4 : f32 to vector<2x16x16xf32>
    %11 = arith.mulf %9, %10 : vector<2x16x16xf32>
    %12 = tpu.iota {dimensions = array<i32: 1>} : vector<2x16x16xi32>
    %13 = tpu.iota {dimensions = array<i32: 2>} : vector<2x16x16xi32>
    %14 = arith.cmpi sle, %13, %12 : vector<2x16x16xi32>
    %cst_5 = arith.constant -1.000000e+30 : f32
    %15 = vector.broadcast %cst_5 : f32 to vector<2x16x16xf32>
    %16 = arith.select %14, %11, %15 : vector<2x16x16xi1>, vector<2x16x16xf32>
    %cst_6 = arith.constant dense<0xFF800000> : vector<2x16xf32>
    %17 = vector.multi_reduction <maximumf>, %16, %cst_6 [2] : vector<2x16x16xf32> to vector<2x16xf32>
    %18 = vector.shape_cast %17 : vector<2x16xf32> to vector<2x16x1xf32>
    %19 = vector.broadcast %18 : vector<2x16x1xf32> to vector<2x16x16xf32>
    %20 = arith.subf %16, %19 : vector<2x16x16xf32>
    %21 = math.exp %20 : vector<2x16x16xf32>
    %cst_7 = arith.constant dense<0.000000e+00> : vector<2x16xf32>
    %22 = vector.multi_reduction <add>, %21, %cst_7 [2] : vector<2x16x16xf32> to vector<2x16xf32>
    %23 = vector.shape_cast %22 : vector<2x16xf32> to vector<2x16x1xf32>
    %24 = vector.broadcast %23 : vector<2x16x1xf32> to vector<2x16x16xf32>
    %25 = arith.divf %21, %24 : vector<2x16x16xf32>
    "tpu.trace_start"() <{level = 10 : i32, message = "bqk,bkd->bqd"}> : () -> ()
    %cst_8 = arith.constant dense<0.000000e+00> : vector<2x16x64xf32>
    %26 = tpu.matmul %25, %8, %cst_8 {dimension_numbers = #tpu.dot_dimension_numbers<[2], [1], [1], [2], [0, 0, 0, 1, 1, 2], [0], [0]>} : vector<2x16x16xf32>, vector<2x16x64xf32>, vector<2x16x64xf32> -> vector<2x16x64xf32>
    "tpu.trace_stop"() : () -> ()
    %c0_9 = arith.constant 0 : index
    %c0_10 = arith.constant 0 : index
    %c0_11 = arith.constant 0 : index
    %27 = vector.load %arg2[%c0_9, %c0_10, %c0_11] : memref<2x16x64xf32, #tpu.memory_space<vmem>>, vector<2x16x64xf32>
    tpu.vector_store %arg2[%c0_9, %c0_10, %c0_11], %26 {strides = array<i32>} : memref<2x16x64xf32, #tpu.memory_space<vmem>>, vector<2x16x64xf32>,
    return
  }
}

</mosaic_0001>

<llo_original>
// kernel: tpu_custom_call.1
$region0: #{tpu_custom_call.1}
  #allocation0 [shape = 'u32[]', space=smem, size = 0x4, offset = 0x4, fixed_abs, tag = 'smem constant byte address 0x4 - core index']
  #allocation1 [shape = 'u32[144,128]{1,0:T(1,128)}', space=vmem, size = 0x12000, scoped, tag = 'internal scratch']
  %s0 = inlined_call_operand.vmem [shape: bf16[32,384], index: 0, kind: input, shape index: {}]
  %s1 = inlined_call_operand.vmem [shape: bf16[384,192], index: 1, kind: input, shape index: {}]
  %s2 = inlined_call_operand.hbm [shape: f32[2,16,64], index: 2, kind: output, shape index: {}]
  %s3 = sld [smem:[#allocation0]]
  $region18: #{tpu_custom_call.1} parent=0
    _
  %s5 = ssub.s32 1, %s3
  %s6 = scalar_select 0, %s5, %s3
  $region1: #{tpu_custom_call.1} parent=0
    #allocation2 [shape = 'u8[16384]{0}', space=vmem, size = 0x4000, scoped, tag = 'output window, operand 0, single buffered']
    #allocation3 [shape = 's32[1]{0}', space=sflag, size = 0x4, scoped, tag = 'scoped memory for tpu_custom_call.1']
    %7 = vsyncpa [#allocation3], 0
    // Predicated region
    $region2: #{tpu_custom_call.1} parent=1 // pred_check
      _
    $region3: #{tpu_custom_call.1} parent=1 // pred_check_branch
      %9 = sbr.rel (0) target = $region5
    $region4: #{tpu_custom_call.1} parent=1 // pred_region
      _
    $region5: #{tpu_custom_call.1} parent=1 // pred_fallthru
      _
    // Predicated region
    $region6: #{tpu_custom_call.1} parent=1 // pred_check
      _
    $region7: #{tpu_custom_call.1} parent=1 // pred_check_branch
      %11 = sbr.rel (0) target = $region9
    $region8: #{tpu_custom_call.1} parent=1 // pred_region
      _
    $region9: #{tpu_custom_call.1} parent=1 // pred_fallthru
      _
    %v13 = vld [vmem:[%s0] sm:$0xff]
    %v14 = vld [vmem:[%s0 + $0x8] sm:$0xf]
    %v15 = vld [vmem:[%s0 + $0xc] sm:$0xff]
    %v16 = vld [vmem:[%s0 + $0x14] sm:$0xf]
    %v17 = vld [vmem:[%s0 + $0x18] sm:$0xff]
    %v18 = vld [vmem:[%s0 + $0x20] sm:$0xf]
    %v19 = vld [vmem:[%s0 + $0x24] sm:$0xff]
    %v20 = vld [vmem:[%s0 + $0x2c] sm:$0xf]
    %v21 = vld [vmem:[%s1] sm:$0xff]
    %v22 = vld [vmem:[%s1 + $0x8] sm:$0xff]
    %v23 = vld [vmem:[%s1 + $0x10] sm:$0xff]
    %v24 = vld [vmem:[%s1 + $0x18] sm:$0xff]
    %v25 = vld [vmem:[%s1 + $0x20] sm:$0xff]
    %v26 = vld [vmem:[%s1 + $0x28] sm:$0xff]
    %v27 = vld [vmem:[%s1 + $0x30] sm:$0xff]
    %v28 = vld [vmem:[%s1 + $0x38] sm:$0xff]
    %v29 = vld [vmem:[%s1 + $0x40] sm:$0xff]
    %v30 = vld [vmem:[%s1 + $0x48] sm:$0xff]
    %v31 = vld [vmem:[%s1 + $0x50] sm:$0xff]
    %v32 = vld [vmem:[%s1 + $0x58] sm:$0xff]
    %v33 = vld [vmem:[%s1 + $0x60] sm:$0xff]
    %v34 = vld [vmem:[%s1 + $0x68] sm:$0xff]
    %v35 = vld [vmem:[%s1 + $0x70] sm:$0xff]
    %v36 = vld [vmem:[%s1 + $0x78] sm:$0xff]
    %v37 = vld [vmem:[%s1 + $0x80] sm:$0xff]
    %v38 = vld [vmem:[%s1 + $0x88] sm:$0xff]
    %v39 = vld [vmem:[%s1 + $0x90] sm:$0xff]
    %v40 = vld [vmem:[%s1 + $0x98] sm:$0xff]
    %v41 = vld [vmem:[%s1 + $0xa0] sm:$0xff]
    %v42 = vld [vmem:[%s1 + $0xa8] sm:$0xff]
    %v43 = vld [vmem:[%s1 + $0xb0] sm:$0xff]
    %v44 = vld [vmem:[%s1 + $0xb8] sm:$0xff]
    %v45 = vld [vmem:[%s1 + $0xc0] sm:$0xff]
    %v46 = vld [vmem:[%s1 + $0xc8] sm:$0xff]
    %v47 = vld [vmem:[%s1 + $0xd0] sm:$0xff]
    %v48 = vld [vmem:[%s1 + $0xd8] sm:$0xff]
    %v49 = vld [vmem:[%s1 + $0xe0] sm:$0xff]
    %v50 = vld [vmem:[%s1 + $0xe8] sm:$0xff]
    %v51 = vld [vmem:[%s1 + $0xf0] sm:$0xff]
    %v52 = vld [vmem:[%s1 + $0xf8] sm:$0xff]
    %v53 = vld [vmem:[%s1 + $0x100] sm:$0xff]
    %v54 = vld [vmem:[%s1 + $0x108] sm:$0xff]
    %v55 = vld [vmem:[%s1 + $0x110] sm:$0xff]
    %v56 = vld [vmem:[%s1 + $0x118] sm:$0xff]
    %v57 = vld [vmem:[%s1 + $0x120] sm:$0xff]
    %v58 = vld [vmem:[%s1 + $0x128] sm:$0xff]
    %v59 = vld [vmem:[%s1 + $0x130] sm:$0xff]
    %v60 = vld [vmem:[%s1 + $0x138] sm:$0xff]
    %v61 = vld [vmem:[%s1 + $0x140] sm:$0xff]
    %v62 = vld [vmem:[%s1 + $0x148] sm:$0xff]
    %v63 = vld [vmem:[%s1 + $0x150] sm:$0xff]
    %v64 = vld [vmem:[%s1 + $0x158] sm:$0xff]
    %v65 = vld [vmem:[%s1 + $0x160] sm:$0xff]
    %v66 = vld [vmem:[%s1 + $0x168] sm:$0xff]
    %v67 = vld [vmem:[%s1 + $0x170] sm:$0xff]
    %v68 = vld [vmem:[%s1 + $0x178] sm:$0xff]
    %v77 = vunpack.c.l.b16 %v13
    %v78 = vunpack.c.h.b16 %v13
    %v79 = vunpack.c.l.b16 %v14
    %v80 = vunpack.c.l.b16 %v15
    %v81 = vunpack.c.h.b16 %v15
    %v82 = vunpack.c.l.b16 %v16
    %v83 = vunpack.c.l.b16 %v17
    %v84 = vunpack.c.h.b16 %v17
    %v85 = vunpack.c.l.b16 %v18
    %v86 = vunpack.c.l.b16 %v19
    %v87 = vunpack.c.h.b16 %v19
    %v88 = vunpack.c.l.b16 %v20
    %v89 = vpack.c.b16 %v80, %v77
    %v90 = vpack.c.b16 %v81, %v78
    %v91 = vpack.c.b16 %v82, %v79
    %v92 = vpack.c.b16 %v86, %v83
    %v93 = vpack.c.b16 %v87, %v84
    %v94 = vpack.c.b16 %v88, %v85
    %v149 = vunpack.c.l.b16 %v21
    %v150 = vunpack.c.h.b16 %v21
    %v151 = vunpack.c.l.b16 %v22
    %v152 = vunpack.c.h.b16 %v22
    %v153 = vunpack.c.l.b16 %v23
    %v154 = vunpack.c.h.b16 %v23
    %v155 = vunpack.c.l.b16 %v24
    %v156 = vunpack.c.h.b16 %v24
    %v157 = vunpack.c.l.b16 %v25
    %v158 = vunpack.c.h.b16 %v25
    %v159 = vunpack.c.l.b16 %v26
    %v160 = vunpack.c.h.b16 %v26
    %v161 = vunpack.c.l.b16 %v27
    %v162 = vunpack.c.h.b16 %v27
    %v163 = vunpack.c.l.b16 %v28
    %v164 = vunpack.c.h.b16 %v28
    %v165 = vunpack.c.l.b16 %v29
    %v166 = vunpack.c.h.b16 %v29
    %v167 = vunpack.c.l.b16 %v30
    %v168 = vunpack.c.h.b16 %v30
    %v169 = vunpack.c.l.b16 %v31
    %v170 = vunpack.c.h.b16 %v31
    %v171 = vunpack.c.l.b16 %v32
    %v172 = vunpack.c.h.b16 %v32
    %v173 = vunpack.c.l.b16 %v33
    %v174 = vunpack.c.h.b16 %v33
    %v175 = vunpack.c.l.b16 %v34
    %v176 = vunpack.c.h.b16 %v34
    %v177 = vunpack.c.l.b16 %v35
    %v178 = vunpack.c.h.b16 %v35
    %v179 = vunpack.c.l.b16 %v36
    %v180 = vunpack.c.h.b16 %v36
    %v181 = vunpack.c.l.b16 %v37
    %v182 = vunpack.c.h.b16 %v37
    %v183 = vunpack.c.l.b16 %v38
    %v184 = vunpack.c.h.b16 %v38
    %v185 = vunpack.c.l.b16 %v39
    %v186 = vunpack.c.h.b16 %v39
    %v187 = vunpack.c.l.b16 %v40
    %v188 = vunpack.c.h.b16 %v40
    %v189 = vunpack.c.l.b16 %v41
    %v190 = vunpack.c.h.b16 %v41
    %v191 = vunpack.c.l.b16 %v42
    %v192 = vunpack.c.h.b16 %v42
    %v193 = vunpack.c.l.b16 %v43
    %v194 = vunpack.c.h.b16 %v43
    %v195 = vunpack.c.l.b16 %v44
    %v196 = vunpack.c.h.b16 %v44
    %v197 = vunpack.c.l.b16 %v45
    %v198 = vunpack.c.h.b16 %v45
    %v199 = vunpack.c.l.b16 %v46
    %v200 = vunpack.c.h.b16 %v46
    %v201 = vunpack.c.l.b16 %v47
    %v202 = vunpack.c.h.b16 %v47
    %v203 = vunpack.c.l.b16 %v48
    %v204 = vunpack.c.h.b16 %v48
    %v205 = vunpack.c.l.b16 %v49
    %v206 = vunpack.c.h.b16 %v49
    %v207 = vunpack.c.l.b16 %v50
    %v208 = vunpack.c.h.b16 %v50
    %v209 = vunpack.c.l.b16 %v51
    %v210 = vunpack.c.h.b16 %v51
    %v211 = vunpack.c.l.b16 %v52
    %v212 = vunpack.c.h.b16 %v52
    %v213 = vunpack.c.l.b16 %v53
    %v214 = vunpack.c.h.b16 %v53
    %v215 = vunpack.c.l.b16 %v54
    %v216 = vunpack.c.h.b16 %v54
    %v217 = vunpack.c.l.b16 %v55
    %v218 = vunpack.c.h.b16 %v55
    %v219 = vunpack.c.l.b16 %v56
    %v220 = vunpack.c.h.b16 %v56
    %v221 = vunpack.c.l.b16 %v57
    %v222 = vunpack.c.h.b16 %v57
    %v223 = vunpack.c.l.b16 %v58
    %v224 = vunpack.c.h.b16 %v58
    %v225 = vunpack.c.l.b16 %v59
    %v226 = vunpack.c.h.b16 %v59
    %v227 = vunpack.c.l.b16 %v60
    %v228 = vunpack.c.h.b16 %v60
    %v229 = vunpack.c.l.b16 %v61
    %v230 = vunpack.c.h.b16 %v61
    %v231 = vunpack.c.l.b16 %v62
    %v232 = vunpack.c.h.b16 %v62
    %v233 = vunpack.c.l.b16 %v63
    %v234 = vunpack.c.h.b16 %v63
    %v235 = vunpack.c.l.b16 %v64
    %v236 = vunpack.c.h.b16 %v64
    %v237 = vunpack.c.l.b16 %v65
    %v238 = vunpack.c.h.b16 %v65
    %v239 = vunpack.c.l.b16 %v66
    %v240 = vunpack.c.h.b16 %v66
    %v241 = vunpack.c.l.b16 %v67
    %v242 = vunpack.c.h.b16 %v67
    %v243 = vunpack.c.l.b16 %v68
    %v244 = vunpack.c.h.b16 %v68
    %v245 = vpack.c.b16 %v151, %v149
    %v246 = vpack.c.b16 %v152, %v150
    %v247 = vpack.c.b16 %v155, %v153
    %v248 = vpack.c.b16 %v156, %v154
    %v249 = vpack.c.b16 %v159, %v157
    %v250 = vpack.c.b16 %v160, %v158
    %v251 = vpack.c.b16 %v163, %v161
    %v252 = vpack.c.b16 %v164, %v162
    %v253 = vpack.c.b16 %v167, %v165
    %v254 = vpack.c.b16 %v168, %v166
    %v255 = vpack.c.b16 %v171, %v169
    %v256 = vpack.c.b16 %v172, %v170
    %v257 = vpack.c.b16 %v175, %v173
    %v258 = vpack.c.b16 %v176, %v174
    %v259 = vpack.c.b16 %v179, %v177
    %v260 = vpack.c.b16 %v180, %v178
    %v261 = vpack.c.b16 %v183, %v181
    %v262 = vpack.c.b16 %v184, %v182
    %v263 = vpack.c.b16 %v187, %v185
    %v264 = vpack.c.b16 %v188, %v186
    %v265 = vpack.c.b16 %v191, %v189
    %v266 = vpack.c.b16 %v192, %v190
    %v267 = vpack.c.b16 %v195, %v193
    %v268 = vpack.c.b16 %v196, %v194
    %v269 = vpack.c.b16 %v199, %v197
    %v270 = vpack.c.b16 %v200, %v198
    %v271 = vpack.c.b16 %v203, %v201
    %v272 = vpack.c.b16 %v204, %v202
    %v273 = vpack.c.b16 %v207, %v205
    %v274 = vpack.c.b16 %v208, %v206
    %v275 = vpack.c.b16 %v211, %v209
    %v276 = vpack.c.b16 %v212, %v210
    %v277 = vpack.c.b16 %v215, %v213
    %v278 = vpack.c.b16 %v216, %v214
    %v279 = vpack.c.b16 %v219, %v217
    %v280 = vpack.c.b16 %v220, %v218
    %v281 = vpack.c.b16 %v223, %v221
    %v282 = vpack.c.b16 %v224, %v222
    %v283 = vpack.c.b16 %v227, %v225
    %v284 = vpack.c.b16 %v228, %v226
    %v285 = vpack.c.b16 %v231, %v229
    %v286 = vpack.c.b16 %v232, %v230
    %v287 = vpack.c.b16 %v235, %v233
    %v288 = vpack.c.b16 %v236, %v234
    %v289 = vpack.c.b16 %v239, %v237
    %v290 = vpack.c.b16 %v240, %v238
    %v291 = vpack.c.b16 %v243, %v241
    %v292 = vpack.c.b16 %v244, %v242
    %341 = vmatprep.subr.bf16.mxu0 %v246
    %342 = vmatpush1.bf16.msra.mxu0 %v245
    %343 = vmatprep.subr.bf16.mxu0 %v248
    %344 = vmatpush1.bf16.msra.mxu0 %v247
    %345 = vmatprep.subr.bf16.mxu0 %v250
    %346 = vmatpush1.bf16.msra.mxu0 %v249
    %347 = vmatprep.subr.bf16.mxu0 %v252
    %348 = vmatpush1.bf16.msra.mxu0 %v251
    %349 = vmatprep.subr.bf16.mxu0 %v254
    %350 = vmatpush1.bf16.msra.mxu0 %v253
    %351 = vmatprep.subr.bf16.mxu0 %v256
    %352 = vmatpush1.bf16.msra.mxu0 %v255
    %353 = vmatprep.subr.bf16.mxu0 %v258
    %354 = vmatpush1.bf16.msra.mxu0 %v257
    %355 = vmatprep.subr.bf16.mxu0 %v260
    %356 = vmatpush1.bf16.msra.mxu0 %v259
    %357 = vmatprep.subr.bf16.mxu0 %v262
    %358 = vmatpush1.bf16.msra.mxu0 %v261
    %359 = vmatprep.subr.bf16.mxu0 %v264
    %360 = vmatpush1.bf16.msra.mxu0 %v263
    %361 = vmatprep.subr.bf16.mxu0 %v266
    %362 = vmatpush1.bf16.msra.mxu0 %v265
    %363 = vmatprep.subr.bf16.mxu0 %v268
    %364 = vmatpush1.bf16.msra.mxu0 %v267
    %365 = vmatprep.subr.bf16.mxu0 %v270
    %366 = vmatpush1.bf16.msra.mxu0 %v269
    %367 = vmatprep.subr.bf16.mxu0 %v272
    %368 = vmatpush1.bf16.msra.mxu0 %v271
    %369 = vmatprep.subr.bf16.mxu0 %v274
    %370 = vmatpush1.bf16.msra.mxu0 %v273
    %371 = vmatprep.subr.bf16.mxu0 %v276
    %372 = vmatpush1.bf16.msra.mxu0 %v275
    %373 = vmatprep.mubr.bf16.mxu0 %v90
    %374 = vmatmul.mubr.bf16.gmra.mrb[0].mxu0 %v89
    %v375 = vpop.f32.mrb[0].mxu0
    %v376 = vadd.f32 0.0, %v375
    %v377 = vpop.f32.mrb[0].mxu0
    %v378 = vadd.f32 0.0, %v377
    %v379 = vpop.f32.mrb[0].mxu0
    %v380 = vadd.f32 0.0, %v379
    %v381 = vpop.f32.mrb[0].mxu0
    %v382 = vadd.f32 0.0, %v381
    %383 = vmatprep.mubr.bf16.mxu0 %v93
    %384 = vmatmul.mubr.bf16.gmra.mrb[0].mxu0 %v92
    %v385 = vpop.f32.mrb[0].mxu0
    %v386 = vadd.f32 0.0, %v385
    %v387 = vpop.f32.mrb[0].mxu0
    %v388 = vadd.f32 0.0, %v387
    %v389 = vpop.f32.mrb[0].mxu0
    %v390 = vadd.f32 0.0, %v389
    %v391 = vpop.f32.mrb[0].mxu0
    %v392 = vadd.f32 0.0, %v391
    %393 = vdwg.mxu0
    %394 = vmatprep.subr.bf16.mxu0 %v278
    %395 = vmatpush1.bf16.msra.mxu0 %v277
    %396 = vmatprep.subr.bf16.mxu0 %v280
    %397 = vmatpush1.bf16.msra.mxu0 %v279
    %398 = vmatprep.subr.bf16.mxu0 %v282
    %399 = vmatpush1.bf16.msra.mxu0 %v281
    %400 = vmatprep.subr.bf16.mxu0 %v284
    %401 = vmatpush1.bf16.msra.mxu0 %v283
    %402 = vmatprep.subr.bf16.mxu0 %v286
    %403 = vmatpush1.bf16.msra.mxu0 %v285
    %404 = vmatprep.subr.bf16.mxu0 %v288
    %405 = vmatpush1.bf16.msra.mxu0 %v287
    %406 = vmatprep.subr.bf16.mxu0 %v290
    %407 = vmatpush1.bf16.msra.mxu0 %v289
    %408 = vmatprep.subr.bf16.mxu0 %v292
    %409 = vmatpush1.bf16.msra.mxu0 %v291
    %410 = vmatprep.subr.bf16.mxu0 0
    %411 = vmatpush1.bf16.msra.mxu0 0
    %412 = vmatprep.subr.bf16.mxu0 0
    %413 = vmatpush1.bf16.msra.mxu0 0
    %414 = vmatprep.subr.bf16.mxu0 0
    %415 = vmatpush1.bf16.msra.mxu0 0
    %416 = vmatprep.subr.bf16.mxu0 0
    %417 = vmatpush1.bf16.msra.mxu0 0
    %418 = vmatprep.subr.bf16.mxu0 0
    %419 = vmatpush1.bf16.msra.mxu0 0
    %420 = vmatprep.subr.bf16.mxu0 0
    %421 = vmatpush1.bf16.msra.mxu0 0
    %422 = vmatprep.subr.bf16.mxu0 0
    %423 = vmatpush1.bf16.msra.mxu0 0
    %424 = vmatprep.subr.bf16.mxu0 0
    %425 = vmatpush1.bf16.msra.mxu0 0
    %426 = vmatprep.mubr.bf16.mxu0 0
    %427 = vmatmul.mubr.bf16.gmra.mrb[0].mxu0 %v91
    %v428 = vpop.f32.mrb[0].mxu0
    %v429 = vadd.f32 %v376, %v428
    %v430 = vpop.f32.mrb[0].mxu0
    %v431 = vadd.f32 %v378, %v430
    %v432 = vpop.f32.mrb[0].mxu0
    %v433 = vadd.f32 %v380, %v432
    %v434 = vpop.f32.mrb[0].mxu0
    %v435 = vadd.f32 %v382, %v434
    %436 = vmatprep.mubr.bf16.mxu0 0
    %437 = vmatmul.mubr.bf16.gmra.mrb[0].mxu0 %v94
    %v438 = vpop.f32.mrb[0].mxu0
    %v439 = vadd.f32 %v386, %v438
    %v440 = vpop.f32.mrb[0].mxu0
    %v441 = vadd.f32 %v388, %v440
    %v442 = vpop.f32.mrb[0].mxu0
    %v443 = vadd.f32 %v390, %v442
    %v444 = vpop.f32.mrb[0].mxu0
    %v445 = vadd.f32 %v392, %v444
    %446 = vdwg.mxu0
    %449 = vrot.lane.b32.xlu0 %v429, 64
    %v450 = vpop.permute.xlu0 %449
    %451 = vrot.lane.b32.xlu0 %v433, 64
    %v452 = vpop.permute.xlu0 %451
    %vm453 = vcmask 523264
    %v454 = vsel %vm453, %v450, 0
    %v456 = vsel %vm453, %v452, 0
    %v458 = vsel %vm453, %v429, 0
    %v460 = vsel %vm453, %v433, 0
    %462 = vmatprep.subr.mxu0 0.0
    %463 = vmatpush1.xpose.msra.mxu0 %v458
    %464 = vmatprep.subr.mxu0 0.0
    %465 = vmatpush1.xpose.msra.mxu0 %v460
    %466 = vmatprep.subr.mxu0 0.0
    %467 = vmatpush1.xpose.msra.mxu0 0.0
    %468 = vmatprep.subr.mxu0 0.0
    %469 = vmatpush1.xpose.msra.mxu0 0.0
    %470 = vmatprep.subr.mxu0 0.0
    %471 = vmatpush1.xpose.msra.mxu0 0.0
    %472 = vmatprep.subr.mxu0 0.0
    %473 = vmatpush1.xpose.msra.mxu0 0.0
    %474 = vmatprep.subr.mxu0 0.0
    %475 = vmatpush1.xpose.msra.mxu0 0.0
    %476 = vmatprep.subr.mxu0 0.0
    %477 = vmatpush1.xpose.msra.mxu0 0.0
    %478 = vmatprep.subr.mxu0 0.0
    %479 = vmatpush1.xpose.msra.mxu0 0.0
    %480 = vmatprep.subr.mxu0 0.0
    %481 = vmatpush1.xpose.msra.mxu0 0.0
    %482 = vmatprep.subr.mxu0 0.0
    %483 = vmatpush1.xpose.msra.mxu0 0.0
    %484 = vmatprep.subr.mxu0 0.0
    %485 = vmatpush1.xpose.msra.mxu0 0.0
    %486 = vmatprep.subr.mxu0 0.0
    %487 = vmatpush1.xpose.msra.mxu0 0.0
    %488 = vmatprep.subr.mxu0 0.0
    %489 = vmatpush1.xpose.msra.mxu0 0.0
    %490 = vmatprep.subr.mxu0 0.0
    %491 = vmatpush1.xpose.msra.mxu0 0.0
    %492 = vmatprep.subr.mxu0 0.0
    %493 = vmatpush1.xpose.msra.mxu0 0.0
    %494 = vmatprep.subr.mxu0 0.0
    %495 = vmatpush1.xpose.msra.mxu0 0.0
    %496 = vmatprep.subr.mxu0 0.0
    %497 = vmatpush1.xpose.msra.mxu0 0.0
    %498 = vmatprep.subr.mxu0 0.0
    %499 = vmatpush1.xpose.msra.mxu0 0.0
    %500 = vmatprep.subr.mxu0 0.0
    %501 = vmatpush1.xpose.msra.mxu0 0.0
    %502 = vmatprep.subr.mxu0 0.0
    %503 = vmatpush1.xpose.msra.mxu0 0.0
    %504 = vmatprep.subr.mxu0 0.0
    %505 = vmatpush1.xpose.msra.mxu0 0.0
    %506 = vmatprep.subr.mxu0 0.0
    %507 = vmatpush1.xpose.msra.mxu0 0.0
    %508 = vmatprep.subr.mxu0 0.0
    %509 = vmatpush1.xpose.msra.mxu0 0.0
    %510 = vmatprep.subr.mxu0 0.0
    %511 = vmatpush1.xpose.msra.mxu0 0.0
    %512 = vmatprep.subr.mxu0 0.0
    %513 = vmatpush1.xpose.msra.mxu0 0.0
    %514 = vmatprep.subr.mxu0 0.0
    %515 = vmatpush1.xpose.msra.mxu0 0.0
    %516 = vmatprep.subr.mxu0 0.0
    %517 = vmatpush1.xpose.msra.mxu0 0.0
    %518 = vmatprep.subr.mxu0 0.0
    %519 = vmatpush1.xpose.msra.mxu0 0.0
    %520 = vmatprep.subr.mxu0 0.0
    %521 = vmatpush1.xpose.msra.mxu0 0.0
    %522 = vmatprep.subr.mxu0 0.0
    %523 = vmatpush1.xpose.msra.mxu0 0.0
    %524 = vmatprep.subr.mxu0 0.0
    %525 = vmatpush1.xpose.msra.mxu0 0.0
    %526 = vmatprep.mubr.f32.mxu0 0.0
    %527 = vmatmul.mubr.f32.gmra.mrb[0].mxu0 %v454
    %v528 = vpop.f32.mrb[0].mxu0
    %v529 = vadd.f32 0.0, %v528
    %v530 = vpop.f32.mrb[0].mxu0
    %531 = vmatprep.mubr.f32.mxu0 0.0
    %532 = vmatmul.mubr.f32.gmra.mrb[0].mxu0 %v456
    %v533 = vpop.f32.mrb[0].mxu0
    %v534 = vadd.f32 0.0, %v533
    %v535 = vpop.f32.mrb[0].mxu0
    %536 = vdwg.mxu0
    %539 = vrot.lane.b32.xlu0 %v439, 64
    %v540 = vpop.permute.xlu0 %539
    %541 = vrot.lane.b32.xlu0 %v443, 64
    %v542 = vpop.permute.xlu0 %541
    %v543 = vsel %vm453, %v540, 0
    %v545 = vsel %vm453, %v542, 0
    %v547 = vsel %vm453, %v439, 0
    %v549 = vsel %vm453, %v443, 0
    %551 = vmatprep.subr.mxu0 0.0
    %552 = vmatpush1.xpose.msra.mxu0 %v547
    %553 = vmatprep.subr.mxu0 0.0
    %554 = vmatpush1.xpose.msra.mxu0 %v549
    %555 = vmatprep.subr.mxu0 0.0
    %556 = vmatpush1.xpose.msra.mxu0 0.0
    %557 = vmatprep.subr.mxu0 0.0
    %558 = vmatpush1.xpose.msra.mxu0 0.0
    %559 = vmatprep.subr.mxu0 0.0
    %560 = vmatpush1.xpose.msra.mxu0 0.0
    %561 = vmatprep.subr.mxu0 0.0
    %562 = vmatpush1.xpose.msra.mxu0 0.0
    %563 = vmatprep.subr.mxu0 0.0
    %564 = vmatpush1.xpose.msra.mxu0 0.0
    %565 = vmatprep.subr.mxu0 0.0
    %566 = vmatpush1.xpose.msra.mxu0 0.0
    %567 = vmatprep.subr.mxu0 0.0
    %568 = vmatpush1.xpose.msra.mxu0 0.0
    %569 = vmatprep.subr.mxu0 0.0
    %570 = vmatpush1.xpose.msra.mxu0 0.0
    %571 = vmatprep.subr.mxu0 0.0
    %572 = vmatpush1.xpose.msra.mxu0 0.0
    %573 = vmatprep.subr.mxu0 0.0
    %574 = vmatpush1.xpose.msra.mxu0 0.0
    %575 = vmatprep.subr.mxu0 0.0
    %576 = vmatpush1.xpose.msra.mxu0 0.0
    %577 = vmatprep.subr.mxu0 0.0
    %578 = vmatpush1.xpose.msra.mxu0 0.0
    %579 = vmatprep.subr.mxu0 0.0
    %580 = vmatpush1.xpose.msra.mxu0 0.0
    %581 = vmatprep.subr.mxu0 0.0
    %582 = vmatpush1.xpose.msra.mxu0 0.0
    %583 = vmatprep.subr.mxu0 0.0
    %584 = vmatpush1.xpose.msra.mxu0 0.0
    %585 = vmatprep.subr.mxu0 0.0
    %586 = vmatpush1.xpose.msra.mxu0 0.0
    %587 = vmatprep.subr.mxu0 0.0
    %588 = vmatpush1.xpose.msra.mxu0 0.0
    %589 = vmatprep.subr.mxu0 0.0
    %590 = vmatpush1.xpose.msra.mxu0 0.0
    %591 = vmatprep.subr.mxu0 0.0
    %592 = vmatpush1.xpose.msra.mxu0 0.0
    %593 = vmatprep.subr.mxu0 0.0
    %594 = vmatpush1.xpose.msra.mxu0 0.0
    %595 = vmatprep.subr.mxu0 0.0
    %596 = vmatpush1.xpose.msra.mxu0 0.0
    %597 = vmatprep.subr.mxu0 0.0
    %598 = vmatpush1.xpose.msra.mxu0 0.0
    %599 = vmatprep.subr.mxu0 0.0
    %600 = vmatpush1.xpose.msra.mxu0 0.0
    %601 = vmatprep.subr.mxu0 0.0
    %602 = vmatpush1.xpose.msra.mxu0 0.0
    %603 = vmatprep.subr.mxu0 0.0
    %604 = vmatpush1.xpose.msra.mxu0 0.0
    %605 = vmatprep.subr.mxu0 0.0
    %606 = vmatpush1.xpose.msra.mxu0 0.0
    %607 = vmatprep.subr.mxu0 0.0
    %608 = vmatpush1.xpose.msra.mxu0 0.0
    %609 = vmatprep.subr.mxu0 0.0
    %610 = vmatpush1.xpose.msra.mxu0 0.0
    %611 = vmatprep.subr.mxu0 0.0
    %612 = vmatpush1.xpose.msra.mxu0 0.0
    %613 = vmatprep.subr.mxu0 0.0
    %614 = vmatpush1.xpose.msra.mxu0 0.0
    %615 = vmatprep.mubr.f32.mxu0 0.0
    %616 = vmatmul.mubr.f32.gmra.mrb[0].mxu0 %v543
    %v617 = vpop.f32.mrb[0].mxu0
    %v618 = vadd.f32 0.0, %v617
    %v619 = vpop.f32.mrb[0].mxu0
    %620 = vmatprep.mubr.f32.mxu0 0.0
    %621 = vmatmul.mubr.f32.gmra.mrb[0].mxu0 %v545
    %v622 = vpop.f32.mrb[0].mxu0
    %v623 = vadd.f32 0.0, %v622
    %v624 = vpop.f32.mrb[0].mxu0
    %625 = vdwg.mxu0
    %v626 = vmul.f32 %v529, 0.125
    %v627 = vmul.f32 %v534, 0.125
    %v628 = vmul.f32 %v618, 0.125
    %v629 = vmul.f32 %v623, 0.125
    %v630 = vlaneseq
    %v631 = vshrl.u32 %v630, 7
    %v632 = vadd.s32 %v631, 8
    %v633 = vlaneseq
    %v634 = vand.u32 %v633, 127
    %vm635 = vcmp.le.s32.totalorder %v634, %v631
    %vm636 = vcmp.le.s32.totalorder %v634, %v632
    %v637 = vsel %vm635, %v626, -1e+30
    %v638 = vsel %vm636, %v627, -1e+30
    %v639 = vsel %vm635, %v628, -1e+30
    %v640 = vsel %vm636, %v629, -1e+30
    %vm641 = vcmask 130048
    %v642 = vsel %vm641, %v637, -inf
    %643 = vmax.xlane.f32.xlu0 %v642
    %v644 = vpop.xlane.xlu0 %643
    %v645 = vsel %vm641, %v638, -inf
    %646 = vmax.xlane.f32.xlu0 %v645
    %v647 = vpop.xlane.xlu0 %646
    %v648 = vsel %vm641, %v639, -inf
    %649 = vmax.xlane.f32.xlu0 %v648
    %v650 = vpop.xlane.xlu0 %649
    %v651 = vsel %vm641, %v640, -inf
    %652 = vmax.xlane.f32.xlu0 %v651
    %v653 = vpop.xlane.xlu0 %652
    %v654 = vsub.f32 %v637, %v644
    %v655 = vsub.f32 %v638, %v647
    %v656 = vsub.f32 %v639, %v650
    %v657 = vsub.f32 %v640, %v653
    %v658 = vmul.f32 %v654, 1.442695
    %v659 = vpow.pop %v658
    %v660 = vmul.f32 %v655, 1.442695
    %v661 = vpow.pop %v660
    %v662 = vmul.f32 %v656, 1.442695
    %v663 = vpow.pop %v662
    %v664 = vmul.f32 %v657, 1.442695
    %v665 = vpow.pop %v664
    %v666 = vsel %vm641, %v659, 0.0
    %667 = vadd.xlane.f32.xlu0 %v666
    %v668 = vpop.xlane.xlu0 %667
    %v669 = vsel %vm641, %v661, 0.0
    %670 = vadd.xlane.f32.xlu0 %v669
    %v671 = vpop.xlane.xlu0 %670
    %v672 = vsel %vm641, %v663, 0.0
    %673 = vadd.xlane.f32.xlu0 %v672
    %v674 = vpop.xlane.xlu0 %673
    %v675 = vsel %vm641, %v665, 0.0
    %676 = vadd.xlane.f32.xlu0 %v675
    %v677 = vpop.xlane.xlu0 %676
    %v678 = vrcp.pop %v668
    %v679 = vmul.f32 %v659, %v678
    %v680 = vrcp.pop %v671
    %v681 = vmul.f32 %v661, %v680
    %v682 = vrcp.pop %v674
    %v683 = vmul.f32 %v663, %v682
    %v684 = vrcp.pop %v677
    %v685 = vmul.f32 %v665, %v684
    %v687 = vsel %vm641, %v679, 0
    %v690 = vsel %vm641, %v681, 0
    %692 = vmatprep.subr.mxu0 0.0
    %693 = vmatpush1.msra.mxu0 %v431
    %694 = vmatprep.subr.mxu0 0.0
    %695 = vmatpush1.msra.mxu0 %v435
    %696 = vmatprep.subr.mxu0 0.0
    %697 = vmatpush1.msra.mxu0 0.0
    %698 = vmatprep.subr.mxu0 0.0
    %699 = vmatpush1.msra.mxu0 0.0
    %700 = vmatprep.subr.mxu0 0.0
    %701 = vmatpush1.msra.mxu0 0.0
    %702 = vmatprep.subr.mxu0 0.0
    %703 = vmatpush1.msra.mxu0 0.0
    %704 = vmatprep.subr.mxu0 0.0
    %705 = vmatpush1.msra.mxu0 0.0
    %706 = vmatprep.subr.mxu0 0.0
    %707 = vmatpush1.msra.mxu0 0.0
    %708 = vmatprep.subr.mxu0 0.0
    %709 = vmatpush1.msra.mxu0 0.0
    %710 = vmatprep.subr.mxu0 0.0
    %711 = vmatpush1.msra.mxu0 0.0
    %712 = vmatprep.subr.mxu0 0.0
    %713 = vmatpush1.msra.mxu0 0.0
    %714 = vmatprep.subr.mxu0 0.0
    %715 = vmatpush1.msra.mxu0 0.0
    %716 = vmatprep.subr.mxu0 0.0
    %717 = vmatpush1.msra.mxu0 0.0
    %718 = vmatprep.subr.mxu0 0.0
    %719 = vmatpush1.msra.mxu0 0.0
    %720 = vmatprep.subr.mxu0 0.0
    %721 = vmatpush1.msra.mxu0 0.0
    %722 = vmatprep.subr.mxu0 0.0
    %723 = vmatpush1.msra.mxu0 0.0
    %724 = vmatprep.subr.mxu0 0.0
    %725 = vmatpush1.msra.mxu0 0.0
    %726 = vmatprep.subr.mxu0 0.0
    %727 = vmatpush1.msra.mxu0 0.0
    %728 = vmatprep.subr.mxu0 0.0
    %729 = vmatpush1.msra.mxu0 0.0
    %730 = vmatprep.subr.mxu0 0.0
    %731 = vmatpush1.msra.mxu0 0.0
    %732 = vmatprep.subr.mxu0 0.0
    %733 = vmatpush1.msra.mxu0 0.0
    %734 = vmatprep.subr.mxu0 0.0
    %735 = vmatpush1.msra.mxu0 0.0
    %736 = vmatprep.subr.mxu0 0.0
    %737 = vmatpush1.msra.mxu0 0.0
    %738 = vmatprep.subr.mxu0 0.0
    %739 = vmatpush1.msra.mxu0 0.0
    %740 = vmatprep.subr.mxu0 0.0
    %741 = vmatpush1.msra.mxu0 0.0
    %742 = vmatprep.subr.mxu0 0.0
    %743 = vmatpush1.msra.mxu0 0.0
    %744 = vmatprep.subr.mxu0 0.0
    %745 = vmatpush1.msra.mxu0 0.0
    %746 = vmatprep.subr.mxu0 0.0
    %747 = vmatpush1.msra.mxu0 0.0
    %748 = vmatprep.subr.mxu0 0.0
    %749 = vmatpush1.msra.mxu0 0.0
    %750 = vmatprep.subr.mxu0 0.0
    %751 = vmatpush1.msra.mxu0 0.0
    %752 = vmatprep.subr.mxu0 0.0
    %753 = vmatpush1.msra.mxu0 0.0
    %754 = vmatprep.subr.mxu0 0.0
    %755 = vmatpush1.msra.mxu0 0.0
    %756 = vmatprep.mubr.f32.mxu0 0.0
    %757 = vmatmul.mubr.f32.gmra.mrb[0].mxu0 %v687
    %v758 = vpop.f32.mrb[0].mxu0
    %v759 = vadd.f32 0.0, %v758
    %v760 = vpop.f32.mrb[0].mxu0
    %761 = vmatprep.mubr.f32.mxu0 0.0
    %762 = vmatmul.mubr.f32.gmra.mrb[0].mxu0 %v690
    %v763 = vpop.f32.mrb[0].mxu0
    %v764 = vadd.f32 0.0, %v763
    %v765 = vpop.f32.mrb[0].mxu0
    %766 = vdwg.mxu0
    %v768 = vsel %vm641, %v683, 0
    %v771 = vsel %vm641, %v685, 0
    %773 = vmatprep.subr.mxu0 0.0
    %774 = vmatpush1.msra.mxu0 %v441
    %775 = vmatprep.subr.mxu0 0.0
    %776 = vmatpush1.msra.mxu0 %v445
    %777 = vmatprep.subr.mxu0 0.0
    %778 = vmatpush1.msra.mxu0 0.0
    %779 = vmatprep.subr.mxu0 0.0
    %780 = vmatpush1.msra.mxu0 0.0
    %781 = vmatprep.subr.mxu0 0.0
    %782 = vmatpush1.msra.mxu0 0.0
    %783 = vmatprep.subr.mxu0 0.0
    %784 = vmatpush1.msra.mxu0 0.0
    %785 = vmatprep.subr.mxu0 0.0
    %786 = vmatpush1.msra.mxu0 0.0
    %787 = vmatprep.subr.mxu0 0.0
    %788 = vmatpush1.msra.mxu0 0.0
    %789 = vmatprep.subr.mxu0 0.0
    %790 = vmatpush1.msra.mxu0 0.0
    %791 = vmatprep.subr.mxu0 0.0
    %792 = vmatpush1.msra.mxu0 0.0
    %793 = vmatprep.subr.mxu0 0.0
    %794 = vmatpush1.msra.mxu0 0.0
    %795 = vmatprep.subr.mxu0 0.0
    %796 = vmatpush1.msra.mxu0 0.0
    %797 = vmatprep.subr.mxu0 0.0
    %798 = vmatpush1.msra.mxu0 0.0
    %799 = vmatprep.subr.mxu0 0.0
    %800 = vmatpush1.msra.mxu0 0.0
    %801 = vmatprep.subr.mxu0 0.0
    %802 = vmatpush1.msra.mxu0 0.0
    %803 = vmatprep.subr.mxu0 0.0
    %804 = vmatpush1.msra.mxu0 0.0
    %805 = vmatprep.subr.mxu0 0.0
    %806 = vmatpush1.msra.mxu0 0.0
    %807 = vmatprep.subr.mxu0 0.0
    %808 = vmatpush1.msra.mxu0 0.0
    %809 = vmatprep.subr.mxu0 0.0
    %810 = vmatpush1.msra.mxu0 0.0
    %811 = vmatprep.subr.mxu0 0.0
    %812 = vmatpush1.msra.mxu0 0.0
    %813 = vmatprep.subr.mxu0 0.0
    %814 = vmatpush1.msra.mxu0 0.0
    %815 = vmatprep.subr.mxu0 0.0
    %816 = vmatpush1.msra.mxu0 0.0
    %817 = vmatprep.subr.mxu0 0.0
    %818 = vmatpush1.msra.mxu0 0.0
    %819 = vmatprep.subr.mxu0 0.0
    %820 = vmatpush1.msra.mxu0 0.0
    %821 = vmatprep.subr.mxu0 0.0
    %822 = vmatpush1.msra.mxu0 0.0
    %823 = vmatprep.subr.mxu0 0.0
    %824 = vmatpush1.msra.mxu0 0.0
    %825 = vmatprep.subr.mxu0 0.0
    %826 = vmatpush1.msra.mxu0 0.0
    %827 = vmatprep.subr.mxu0 0.0
    %828 = vmatpush1.msra.mxu0 0.0
    %829 = vmatprep.subr.mxu0 0.0
    %830 = vmatpush1.msra.mxu0 0.0
    %831 = vmatprep.subr.mxu0 0.0
    %832 = vmatpush1.msra.mxu0 0.0
    %833 = vmatprep.subr.mxu0 0.0
    %834 = vmatpush1.msra.mxu0 0.0
    %835 = vmatprep.subr.mxu0 0.0
    %836 = vmatpush1.msra.mxu0 0.0
    %837 = vmatprep.mubr.f32.mxu0 0.0
    %838 = vmatmul.mubr.f32.gmra.mrb[0].mxu0 %v768
    %v839 = vpop.f32.mrb[0].mxu0
    %v840 = vadd.f32 0.0, %v839
    %v841 = vpop.f32.mrb[0].mxu0
    %842 = vmatprep.mubr.f32.mxu0 0.0
    %843 = vmatmul.mubr.f32.gmra.mrb[0].mxu0 %v771
    %v844 = vpop.f32.mrb[0].mxu0
    %v845 = vadd.f32 0.0, %v844
    %v846 = vpop.f32.mrb[0].mxu0
    %847 = vdwg.mxu0
    %848 = vst.msk [vmem:[#allocation2] sm:$0xff] %vm453, %v759
    %849 = vst.msk [vmem:[#allocation2 + $0x8] sm:$0xff] %vm453, %v764
    %850 = vst.msk [vmem:[#allocation2 + $0x10] sm:$0xff] %vm453, %v840
    %851 = vst.msk [vmem:[#allocation2 + $0x18] sm:$0xff] %vm453, %v845
    // Predicated region
    $region10: #{tpu_custom_call.1} parent=1 // pred_check
      _
    $region11: #{tpu_custom_call.1} parent=1 // pred_check_branch
      %853 = sbr.rel (0) target = $region13
    $region12: #{tpu_custom_call.1} parent=1 // pred_region
      %s855 = ssub.s32 512, 512
      %856 = vsyncadd [#allocation3], %s855
      %s857 = sshll.u32 [#allocation2], 4
      %s858 = int_to_ptr.vmem [resolvable:$true] %s857
      %863 = dma.vmem_to_hbm [thread:$0]  %s858, 512, %s2, [#allocation3], 128, 128, 8
    $region13: #{tpu_custom_call.1} parent=1 // pred_fallthru
      _
    // Predicated region
    $region14: #{tpu_custom_call.1} parent=1 // pred_check
      _
    $region15: #{tpu_custom_call.1} parent=1 // pred_check_branch
      %865 = sbr.rel (0) target = $region17
    $region16: #{tpu_custom_call.1} parent=1 // pred_region
      %866 = dma.done [#allocation3], 512
    $region17: #{tpu_custom_call.1} parent=1 // pred_fallthru
      _
    %867 = vsyncpa [#allocation3], 1

</llo_original>
